<compile_context>
chip_gen: v5e
topology: v5e:2x2
jax: 0.10.0
libtpu: 0.0.40
codegen_flags: <defaults>
</compile_context>

<pallas_src>
import functools

import jax
import jax.numpy as jnp
from jax import lax
from jax.experimental import pallas as pl
from jax.experimental.pallas import tpu as pltpu

_LANE = 128


def _round_up(x, m):
    return ((x + m - 1) // m) * m


def _conv_down_kernel(x_ref, w_ref, b_ref, o_ref, *, kernel_size, stride, tile_l, extra):
    """One lane-dense output tile: o[0] = (C_out, TILE_L).

    x_ref: (1, stride, C_in, M)  phase-split padded input, one batch row.
           x_ref[0, p, c, m] == x_pad[c, m*stride + p]
    w_ref: (K, C_out, C_in)
    b_ref: (C_out, 1) float32
    o_ref: (1, C_out, TILE_L)
    """
    j = pl.program_id(1)
    base = pl.multiple_of(j * tile_l, tile_l)        # 128-aligned lane offset
    c_out = o_ref.shape[1]

    # Start the accumulator at the (broadcast) bias -> bias add is fused.
    acc = jnp.broadcast_to(b_ref[...], (c_out, tile_l)).astype(jnp.float32)

    for p in range(stride):                           # static unroll (stride small)
        taps = [k for k in range(kernel_size) if k % stride == p]
        if not taps:
            continue
        # One aligned dynamic load per phase; per-tap shifts are static slices.
        win = x_ref[0, p, :, pl.ds(base, tile_l + extra)]         # (C_in, TILE_L+extra)
        for k in taps:
            q = k // stride
            xk = lax.slice_in_dim(win, q, q + tile_l, axis=1)     # (C_in, TILE_L)
            acc = acc + jnp.dot(w_ref[k], xk,
                                preferred_element_type=jnp.float32)

    o_ref[0] = acc.astype(o_ref.dtype)


def conv_downsample(x, weight, bias, *, kernel_size: int, downsample_divide: int,
                    compute_dtype=None):
    """x: (N, C_in, L); weight: (C_out, C_in, K); bias: (C_out,).  Returns (N, C_out, L_out)."""
    n, c_in, length = x.shape
    c_out, c_in_w, k = weight.shape
    assert c_in_w == c_in and k == kernel_size
    stride = downsample_divide

    padding_needed = max(0, kernel_size - 2 + (downsample_divide - 2))
    l_out = (length + padding_needed - kernel_size) // stride + 1
    assert l_out > 0

    # Output tiling (lane axis): multiple of 128, up to 1024.
    tile_l = min(1024, _round_up(l_out, _LANE))
    l_out_pad = _round_up(l_out, tile_l)
    num_tiles = l_out_pad // tile_l

    # Per-tap shift q = k // stride; load an extra 128-aligned chunk so the
    # shift can be applied as a static value slice.
    q_max = (kernel_size - 1) // stride
    extra = _round_up(q_max, _LANE) if q_max > 0 else 0

    # Phase-split input length (lane-aligned).  Zero-extension beyond the
    # PyTorch pad only feeds output columns >= l_out, which are sliced off.
    m = _round_up(max(l_out_pad + extra, -(-length // stride)), _LANE)
    lp = m * stride

    cdt = compute_dtype if compute_dtype is not None else x.dtype

    x_pad = jnp.pad(x, ((0, 0), (0, 0), (0, lp - length)))
    # x_ph[n, p, c, m] = x_pad[n, c, m*stride + p]; same byte count as x (no im2col blowup).
    x_ph = x_pad.reshape(n, c_in, m, stride).transpose(0, 3, 1, 2).astype(cdt)
    w_t = weight.transpose(2, 0, 1).astype(cdt)          # (K, C_out, C_in)
    b_col = bias.reshape(c_out, 1).astype(jnp.float32)   # (C_out, 1)

    kernel = functools.partial(
        _conv_down_kernel,
        kernel_size=kernel_size, stride=stride, tile_l=tile_l, extra=extra)

    itemsize = jnp.dtype(cdt).itemsize
    flops = 2 * n * l_out_pad * c_in * c_out * kernel_size
    bytes_accessed = (n * stride * c_in * m * itemsize          # input
                      + kernel_size * c_out * c_in * itemsize   # weight
                      + c_out * 4                               # bias
                      + n * c_out * l_out_pad * jnp.dtype(x.dtype).itemsize)  # output

    out_pad = pl.pallas_call(
        kernel,
        out_shape=jax.ShapeDtypeStruct((n, c_out, l_out_pad), x.dtype),
        grid_spec=pltpu.PrefetchScalarGridSpec(
            num_scalar_prefetch=0,
            grid=(n, num_tiles),
            in_specs=[
                # Whole batch row; block index constant along the tile axis ->
                # DMA'd once per batch element, reused across L tiles.
                pl.BlockSpec((1, stride, c_in, m), lambda b, j: (b, 0, 0, 0)),
                pl.BlockSpec((kernel_size, c_out, c_in), lambda b, j: (0, 0, 0)),
                pl.BlockSpec((c_out, 1), lambda b, j: (0, 0)),
            ],
            out_specs=pl.BlockSpec((1, c_out, tile_l), lambda b, j: (b, 0, j)),
        ),
        compiler_params=pltpu.CompilerParams(
            dimension_semantics=("parallel", "parallel"),
            vmem_limit_bytes=48 * 1024 * 1024,
        ),
        cost_estimate=pl.CostEstimate(
            flops=flops, transcendentals=0, bytes_accessed=bytes_accessed),
    )(x_ph, w_t, b_col)

    # Drop the lane-padding columns; output is already NCL.
    return out_pad[:, :, :l_out] if l_out_pad != l_out else out_pad


def _reference(x, weight, bias, *, kernel_size, downsample_divide):
    padding_needed = max(0, kernel_size - 2 + (downsample_divide - 2))
    x_pad = jnp.pad(x, ((0, 0), (0, 0), (0, padding_needed)))
    y = lax.conv_general_dilated(
        x_pad, weight,
        window_strides=(downsample_divide,),
        padding="VALID",
        dimension_numbers=("NCH", "OIH", "NCH"),
    )
    return y + bias[None, :, None]


if __name__ == "__main__":
    # ConvDownsample(kernel_size=4, downsample_divide=2, in_dim=8)
    kernel_size = 4
    downsample_divide = 2
    in_dim = 8
    batch = 2
    length = 16

    key = jax.random.PRNGKey(0)
    kx, kw, kb = jax.random.split(key, 3)
    x = jax.random.normal(kx, (batch, in_dim, length), dtype=jnp.float32)
    weight = jax.random.normal(kw, (in_dim, in_dim, kernel_size), dtype=jnp.float32) * 0.1
    bias = jax.random.normal(kb, (in_dim,), dtype=jnp.float32) * 0.1

    fn = jax.jit(functools.partial(
        conv_downsample, kernel_size=kernel_size, downsample_divide=downsample_divide))
    y = fn(x, weight, bias)
    jax.block_until_ready(y)

    y_ref = _reference(x, weight, bias,
                       kernel_size=kernel_size, downsample_divide=downsample_divide)
    assert y.shape == y_ref.shape, (y.shape, y_ref.shape)
    assert jnp.allclose(y, y_ref, atol=1e-4, rtol=1e-4), "mismatch vs conv reference"

    print("KERNEL_OK")
</pallas_src>

<mosaic_0001>
module attributes {stable_mosaic.version = 11 : i64} {
  func.func @_conv_down_kernel(%arg0: i32, %arg1: i32, %arg2: memref<1x2x8x256xf32, #tpu.memory_space<vmem>>, %arg3: memref<4x8x8xf32, #tpu.memory_space<vmem>>, %arg4: memref<8x1xf32, #tpu.memory_space<vmem>>, %arg5: memref<1x8x128xf32, #tpu.memory_space<vmem>>) attributes {dimension_semantics = [#tpu.dimension_semantics<parallel>, #tpu.dimension_semantics<parallel>], iteration_bounds = array<i64: 2, 1>, scalar_prefetch = 0 : i64, scratch_operands = 0 : i64, tpu.core_type = #tpu.core_type<tc>, window_params = [{transform_indices = @transform_0, window_bounds = array<i64: 1, 2, 8, 256>}, {pipeline_mode = #tpu.pipeline_mode<synchronous>, transform_indices = @transform_1, window_bounds = array<i64: 4, 8, 8>}, {pipeline_mode = #tpu.pipeline_mode<synchronous>, transform_indices = @transform_2, window_bounds = array<i64: 8, 1>}, {transform_indices = @transform_3, window_bounds = array<i64: 1, 8, 128>}]} {
    %c128_i32 = arith.constant 128 : i32
    %0 = arith.muli %arg1, %c128_i32 : i32
    %1 = tpu.assume_multiple %0, 128 : i32
    %c0 = arith.constant 0 : index
    %c0_0 = arith.constant 0 : index
    %2 = vector.load %arg4[%c0, %c0_0] : memref<8x1xf32, #tpu.memory_space<vmem>>, vector<8x1xf32>
    %3 = vector.shape_cast %2 : vector<8x1xf32> to vector<8x1xf32>
    %4 = vector.broadcast %3 : vector<8x1xf32> to vector<8x128xf32>
    %c0_1 = arith.constant 0 : index
    %c0_2 = arith.constant 0 : index
    %c0_3 = arith.constant 0 : index
    %5 = arith.index_cast %1 : i32 to index
    %6 = vector.load %arg2[%c0_1, %c0_2, %c0_3, %5] : memref<1x2x8x256xf32, #tpu.memory_space<vmem>>, vector<1x1x8x256xf32>
    %7 = vector.shape_cast %6 : vector<1x1x8x256xf32> to vector<8x256xf32>
    %8 = vector.extract_strided_slice %7 {offsets = [0, 0], sizes = [8, 128], strides = [1, 1]} : vector<8x256xf32> to vector<8x128xf32>
    %c0_4 = arith.constant 0 : index
    %c0_5 = arith.constant 0 : index
    %c0_6 = arith.constant 0 : index
    %9 = vector.load %arg3[%c0_4, %c0_5, %c0_6] : memref<4x8x8xf32, #tpu.memory_space<vmem>>, vector<1x8x8xf32>
    %10 = vector.shape_cast %9 : vector<1x8x8xf32> to vector<8x8xf32>
    %cst = arith.constant dense<0.000000e+00> : vector<8x128xf32>
    %11 = tpu.matmul %10, %8, %cst {dimension_numbers = #tpu.dot_dimension_numbers<[1], [0], [0], [1], [0, 0, 1, 1], [], []>} : vector<8x8xf32>, vector<8x128xf32>, vector<8x128xf32> -> vector<8x128xf32>
    %12 = arith.addf %4, %11 : vector<8x128xf32>
    %13 = vector.extract_strided_slice %7 {offsets = [0, 1], sizes = [8, 128], strides = [1, 1]} : vector<8x256xf32> to vector<8x128xf32>
    %c2 = arith.constant 2 : index
    %c0_7 = arith.constant 0 : index
    %c0_8 = arith.constant 0 : index
    %14 = vector.load %arg3[%c2, %c0_7, %c0_8] : memref<4x8x8xf32, #tpu.memory_space<vmem>>, vector<1x8x8xf32>
    %15 = vector.shape_cast %14 : vector<1x8x8xf32> to vector<8x8xf32>
    %cst_9 = arith.constant dense<0.000000e+00> : vector<8x128xf32>
    %16 = tpu.matmul %15, %13, %cst_9 {dimension_numbers = #tpu.dot_dimension_numbers<[1], [0], [0], [1], [0, 0, 1, 1], [], []>} : vector<8x8xf32>, vector<8x128xf32>, vector<8x128xf32> -> vector<8x128xf32>
    %17 = arith.addf %12, %16 : vector<8x128xf32>
    %c0_10 = arith.constant 0 : index
    %c1 = arith.constant 1 : index
    %c0_11 = arith.constant 0 : index
    %18 = arith.index_cast %1 : i32 to index
    %19 = vector.load %arg2[%c0_10, %c1, %c0_11, %18] : memref<1x2x8x256xf32, #tpu.memory_space<vmem>>, vector<1x1x8x256xf32>
    %20 = vector.shape_cast %19 : vector<1x1x8x256xf32> to vector<8x256xf32>
    %21 = vector.extract_strided_slice %20 {offsets = [0, 0], sizes = [8, 128], strides = [1, 1]} : vector<8x256xf32> to vector<8x128xf32>
    %c1_12 = arith.constant 1 : index
    %c0_13 = arith.constant 0 : index
    %c0_14 = arith.constant 0 : index
    %22 = vector.load %arg3[%c1_12, %c0_13, %c0_14] : memref<4x8x8xf32, #tpu.memory_space<vmem>>, vector<1x8x8xf32>
    %23 = vector.shape_cast %22 : vector<1x8x8xf32> to vector<8x8xf32>
    %cst_15 = arith.constant dense<0.000000e+00> : vector<8x128xf32>
    %24 = tpu.matmul %23, %21, %cst_15 {dimension_numbers = #tpu.dot_dimension_numbers<[1], [0], [0], [1], [0, 0, 1, 1], [], []>} : vector<8x8xf32>, vector<8x128xf32>, vector<8x128xf32> -> vector<8x128xf32>
    %25 = arith.addf %17, %24 : vector<8x128xf32>
    %26 = vector.extract_strided_slice %20 {offsets = [0, 1], sizes = [8, 128], strides = [1, 1]} : vector<8x256xf32> to vector<8x128xf32>
    %c3 = arith.constant 3 : index
    %c0_16 = arith.constant 0 : index
    %c0_17 = arith.constant 0 : index
    %27 = vector.load %arg3[%c3, %c0_16, %c0_17] : memref<4x8x8xf32, #tpu.memory_space<vmem>>, vector<1x8x8xf32>
    %28 = vector.shape_cast %27 : vector<1x8x8xf32> to vector<8x8xf32>
    %cst_18 = arith.constant dense<0.000000e+00> : vector<8x128xf32>
    %29 = tpu.matmul %28, %26, %cst_18 {dimension_numbers = #tpu.dot_dimension_numbers<[1], [0], [0], [1], [0, 0, 1, 1], [], []>} : vector<8x8xf32>, vector<8x128xf32>, vector<8x128xf32> -> vector<8x128xf32>
    %30 = arith.addf %25, %29 : vector<8x128xf32>
    %c0_19 = arith.constant 0 : index
    %c0_20 = arith.constant 0 : index
    %c0_21 = arith.constant 0 : index
    %31 = vector.load %arg5[%c0_19, %c0_20, %c0_21] : memref<1x8x128xf32, #tpu.memory_space<vmem>>, vector<1x8x128xf32>
    %32 = vector.shape_cast %31 : vector<1x8x128xf32> to vector<8x128xf32>
    %33 = vector.shape_cast %30 : vector<8x128xf32> to vector<1x8x128xf32>
    tpu.vector_store %arg5[%c0_19, %c0_20, %c0_21], %33 {strides = array<i32>} : memref<1x8x128xf32, #tpu.memory_space<vmem>>, vector<1x8x128xf32>,
    return
  }
  func.func @transform_0(%arg0: i32, %arg1: i32) -> (i32, i32, i32, i32) {
    %c0_i32 = arith.constant 0 : i32
    %c0_i32_0 = arith.constant 0 : i32
    %c0_i32_1 = arith.constant 0 : i32
    %c0_i32_2 = arith.constant 0 : i32
    return %arg0, %c0_i32, %c0_i32_0, %c0_i32_1 : i32, i32, i32, i32
  }
  func.func @transform_1(%arg0: i32, %arg1: i32) -> (i32, i32, i32) {
    %c0_i32 = arith.constant 0 : i32
    %c0_i32_0 = arith.constant 0 : i32
    %c0_i32_1 = arith.constant 0 : i32
    %c0_i32_2 = arith.constant 0 : i32
    return %c0_i32, %c0_i32_0, %c0_i32_1 : i32, i32, i32
  }
  func.func @transform_2(%arg0: i32, %arg1: i32) -> (i32, i32) {
    %c0_i32 = arith.constant 0 : i32
    %c0_i32_0 = arith.constant 0 : i32
    %c0_i32_1 = arith.constant 0 : i32
    return %c0_i32, %c0_i32_0 : i32, i32
  }
  func.func @transform_3(%arg0: i32, %arg1: i32) -> (i32, i32, i32) {
    %c0_i32 = arith.constant 0 : i32
    %c0_i32_0 = arith.constant 0 : i32
    return %arg0, %c0_i32, %arg1 : i32, i32, i32
  }
}

</mosaic_0001>

<llo_original>
// kernel: conv_downsample.1
$region0: #{conv_downsample.1}
  #allocation0 [shape = 'u32[]', space=smem, size = 0x4, offset = 0x4, fixed_abs, tag = 'smem constant byte address 0x4 - core index']
  #allocation1 [shape = 'u32[72,128]{1,0:T(1,128)}', space=vmem, size = 0x9000, scoped, tag = 'internal scratch']
  %s0 = inlined_call_operand.vmem [shape: f32[2,2,8,256], index: 0, kind: input, shape index: {}]
  %s1 = inlined_call_operand.vmem [shape: f32[4,8,8], index: 1, kind: input, shape index: {}]
  %s2 = inlined_call_operand.vmem [shape: f32[8,1], index: 2, kind: input, shape index: {}]
  %s3 = inlined_call_operand.hbm [shape: f32[2,8,128], index: 3, kind: output, shape index: {}]
  %s4 = sld [smem:[#allocation0]]
  $region45: #{conv_downsample.1} parent=0
    _
  %s6 = ssub.s32 1, %s4
  %s7 = scalar_select 0, %s6, %s4
  $region1: #{conv_downsample.1} parent=0
    #allocation2 [shape = 'u8[8192]{0}', space=vmem, size = 0x2000, scoped, tag = 'output window, operand 0']
    #allocation3 [shape = 's32[2]{0}', space=sflag, size = 0x8, scoped, tag = 'scoped memory for conv_downsample.1']
    %8 = vsyncpa [#allocation3], 0
    %s9 = scalar_lea.sflag [#allocation3], 1
    %10 = vsyncpa %s9, 0
    loop: start=0, step=1, limit=4
    $region2: #{conv_downsample.1} parent=1 // loop_pre_header
      _
    $region3: #{conv_downsample.1} parent=1 // loop_header
      %s12 = sphi 0, %s16
      %p13 = scmp.ge.s32.totalorder %s12, 4
      %s19 = sphi 0, %s31
      %s20 = sphi 0, %s27
      %s21 = sphi 0, %s19
      %s22 = sphi 0, %s20
      %s23 = sphi 0, %s21
      %s24 = sphi 0, %s22
      %s34 = sphi 0, %s36
      %s37 = sphi 0, %s34
      %s38 = sphi 0, %s37
      %s54 = sphi 0, %s38
      %s58 = sphi 0, %s58
      %s60 = sphi 0, %s58
      %s61 = sphi 0, %s60
      %s75 = sphi 0, %s61
      %s79 = sphi 0, %s79
      %s81 = sphi 0, %s79
      %s82 = sphi 0, %s81
      %s96 = sphi 0, %s82
      %s104 = sphi 0, %s106
      %s107 = sphi 0, %s104
      %s108 = sphi 0, %s107
      %s124 = sphi 0, %s108
    $region4: #{conv_downsample.1} parent=1 // loop_header_branch
      %15 = sbr.rel (%p13) target = $region8
    $region5: #{conv_downsample.1} parent=1 // loop_body
      %s17 = ssub.s32 %s12, 1
      %s18 = ssub.s32 %s12, 2
      %s25 = sadd.s32 1, %s20
      %p26 = scmp.ge.s32.totalorder %s25, 1
      %s27 = scalar_select %p26, 0, %s25
      %s28 = sadd.s32 1, %s19
      %s29 = scalar_select %p26, %s28, %s19
      %p30 = scmp.ge.s32.totalorder %s29, 2
      %s31 = scalar_select %p30, 0, %s29
      %s32 = ssub.s32 %s19, %s31
      %p33 = scmp.eq.s32.totalorder %s32, 0
      %s35 = sadd.s32 %s34, 1
      %s36 = scalar_select %p33, %s34, %s35
      %p39 = pneg %p33
      %p40 = scmp.eq.s32.totalorder %s12, 1
      %p41 = por %p39, %p40
      %p42 = scmp.ne.s32.totalorder %s34, %s37
      %p43 = scmp.eq.s32.totalorder %s12, 0
      %p44 = por %p42, %p43
      %p45 = scmp.ne.s32.totalorder %s34, %s37
      %p46 = scmp.eq.s32.totalorder %s17, 1
      %p47 = por %p45, %p46
      %p48 = scmp.ne.s32.totalorder %s37, %s38
      %p49 = scmp.eq.s32.totalorder %s17, 0
      %p50 = por %p48, %p49
      %p51 = scmp.ne.s32.totalorder %s37, %s38
      %p52 = scmp.eq.s32.totalorder %s18, 1
      %p53 = por %p51, %p52
      %p55 = scmp.ne.s32.totalorder %s38, %s54
      %p56 = scmp.eq.s32.totalorder %s18, 0
      %p57 = por %p55, %p56
      %s59 = sadd.s32 %s58, 1
      %p62 = scmp.eq.s32.totalorder %s12, 1
      %p63 = scmp.ne.s32.totalorder %s58, %s60
      %p64 = scmp.eq.s32.totalorder %s12, 0
      %p65 = por %p63, %p64
      %p66 = scmp.ne.s32.totalorder %s58, %s60
      %p67 = scmp.eq.s32.totalorder %s17, 1
      %p68 = por %p66, %p67
      %p69 = scmp.ne.s32.totalorder %s60, %s61
      %p70 = scmp.eq.s32.totalorder %s17, 0
      %p71 = por %p69, %p70
      %p72 = scmp.ne.s32.totalorder %s60, %s61
      %p73 = scmp.eq.s32.totalorder %s18, 1
      %p74 = por %p72, %p73
      %p76 = scmp.ne.s32.totalorder %s61, %s75
      %p77 = scmp.eq.s32.totalorder %s18, 0
      %p78 = por %p76, %p77
      %s80 = sadd.s32 %s79, 1
      %p83 = scmp.eq.s32.totalorder %s12, 1
      %p84 = scmp.ne.s32.totalorder %s79, %s81
      %p85 = scmp.eq.s32.totalorder %s12, 0
      %p86 = por %p84, %p85
      %p87 = scmp.ne.s32.totalorder %s79, %s81
      %p88 = scmp.eq.s32.totalorder %s17, 1
      %p89 = por %p87, %p88
      %p90 = scmp.ne.s32.totalorder %s81, %s82
      %p91 = scmp.eq.s32.totalorder %s17, 0
      %p92 = por %p90, %p91
      %p93 = scmp.ne.s32.totalorder %s81, %s82
      %p94 = scmp.eq.s32.totalorder %s18, 1
      %p95 = por %p93, %p94
      %p97 = scmp.ne.s32.totalorder %s82, %s96
      %p98 = scmp.eq.s32.totalorder %s18, 0
      %p99 = por %p97, %p98
      %s100 = ssub.s32 %s19, %s31
      %s101 = ssub.s32 %s20, %s27
      %s102 = sor.u32 %s100, %s101
      %p103 = scmp.eq.s32.totalorder %s102, 0
      %s105 = sadd.s32 %s104, 1
      %s106 = scalar_select %p103, %s104, %s105
      %p109 = pneg %p103
      %p110 = scmp.eq.s32.totalorder %s12, 1
      %p111 = por %p109, %p110
      %p112 = scmp.ne.s32.totalorder %s104, %s107
      %p113 = scmp.eq.s32.totalorder %s12, 0
      %p114 = por %p112, %p113
      %p115 = scmp.ne.s32.totalorder %s104, %s107
      %p116 = scmp.eq.s32.totalorder %s17, 1
      %p117 = por %p115, %p116
      %p118 = scmp.ne.s32.totalorder %s107, %s108
      %p119 = scmp.eq.s32.totalorder %s17, 0
      %p120 = por %p118, %p119
      %p121 = scmp.ne.s32.totalorder %s107, %s108
      %p122 = scmp.eq.s32.totalorder %s18, 1
      %p123 = por %p121, %p122
      %p125 = scmp.ne.s32.totalorder %s108, %s124
      %p126 = scmp.eq.s32.totalorder %s18, 0
      %p127 = por %p125, %p126
      %p128 = scmp.le.s32.totalorder 1, %s12
      %p129 = scmp.lt.s32.totalorder %s12, 3
      %p130 = pnand %p128, %p129
      %p131 = pneg %p130
      // Predicated region
      $region9: #{conv_downsample.1} parent=5 // pred_check
        _
      $region10: #{conv_downsample.1} parent=5 // pred_check_branch
        %133 = sbr.rel (%p130) target = $region12
      $region11: #{conv_downsample.1} parent=5 // pred_region
        %s134 = ssub.s32 %s12, 1
        // Predicated region
        $region13: #{conv_downsample.1} parent=11 // pred_check
          %p135 = pneg %p71
        $region14: #{conv_downsample.1} parent=11 // pred_check_branch
          %137 = sbr.rel (%p135) target = $region16
        $region15: #{conv_downsample.1} parent=11 // pred_region
          _
        $region16: #{conv_downsample.1} parent=11 // pred_fallthru
          _
        // Predicated region
        $region17: #{conv_downsample.1} parent=11 // pred_check
          %p138 = pneg %p92
        $region18: #{conv_downsample.1} parent=11 // pred_check_branch
          %140 = sbr.rel (%p138) target = $region20
        $region19: #{conv_downsample.1} parent=11 // pred_region
          _
        $region20: #{conv_downsample.1} parent=11 // pred_fallthru
          _
      $region12: #{conv_downsample.1} parent=5 // pred_fallthru
        _
      %p141 = scmp.lt.s32.totalorder %s12, 2
      // Predicated region
      $region21: #{conv_downsample.1} parent=5 // pred_check
        %p142 = pneg %p141
      $region22: #{conv_downsample.1} parent=5 // pred_check_branch
        %144 = sbr.rel (%p142) target = $region24
      $region23: #{conv_downsample.1} parent=5 // pred_region
        // Predicated region
        $region25: #{conv_downsample.1} parent=23 // pred_check
          %p145 = pneg %p44
        $region26: #{conv_downsample.1} parent=23 // pred_check_branch
          %147 = sbr.rel (%p145) target = $region28
        $region27: #{conv_downsample.1} parent=23 // pred_region
          %p148 = scmp.lt.s32.totalorder %s19, 1
          %s149 = scalar_select %p148, %s19, 1
          %s150 = smul.addr %s149, 4
          %s151 = smul.addr %s150, 8
          %s152 = scalar_lea.vmem %s0, %s151
        $region28: #{conv_downsample.1} parent=23 // pred_fallthru
          _
      $region24: #{conv_downsample.1} parent=5 // pred_fallthru
        _
      %p153 = scmp.le.s32.totalorder 1, %s12
      %p154 = scmp.lt.s32.totalorder %s12, 3
      %p155 = pnand %p153, %p154
      %p156 = pneg %p155
      // Predicated region
      $region29: #{conv_downsample.1} parent=5 // pred_check
        _
      $region30: #{conv_downsample.1} parent=5 // pred_check_branch
        %158 = sbr.rel (%p155) target = $region32
      $region31: #{conv_downsample.1} parent=5 // pred_region
        %s159 = ssub.s32 %s12, 1
        %p160 = scmp.lt.s32.totalorder %s21, 1
        %s161 = scalar_select %p160, %s21, 1
        %s162 = smul.addr %s161, 4
        %s163 = smul.addr %s162, 8
        %s164 = scalar_lea.vmem %s0, %s163
        %p165 = pneg %p50
        %p166 = pneg %p47
        %p167 = pneg %p71
        %p168 = pneg %p68
        %p169 = pneg %p92
        %p170 = pneg %p89
        %p171 = pneg %p120
        %p172 = pneg %p117
        %s173 = sand.u32 %s107, 1
        %s174 = scalar_lea.sflag [#allocation3], %s173
        %s175 = sand.u32 %s107, 1
        %s176 = smul.addr %s175, 8
        %s177 = scalar_lea.vmem [#allocation2], %s176
        %p178 = scmp.lt.s32.totalorder %s21, 1
        %s179 = scalar_select %p178, %s21, 1
        %s180 = smul.addr %s179, 4
        %s181 = smul.addr %s180, 8
        %s182 = scalar_lea.vmem %s0, %s181
        %s183 = smul.u32 %s22, 128
        %v184 = vld [vmem:[%s2] sm:$0xff]
        %186 = vset.pattern.permute.xlu0 0
        %187 = vperm.xlu0 %186, %v184
        %v188 = vpop.permute.xlu0 %187
        %s190 = sshra.s32 %s183, 7
        %s191 = sand.u32 %s183, 127
        %s192 = smul.addr %s190, 8
        %s193 = scalar_lea.vmem %s182, %s192
        %v194 = vld [vmem:[%s193] sm:$0xff]
        %v195 = vld [vmem:[%s193 + $0x8] sm:$0xff]
        %v196 = vld [vmem:[%s1] sm:$0xff]
        %vm197 = vcmask 64512
        %v199 = vsel %vm197, %v196, 0
        %201 = vmatpush.msra.mxu0 0.0
        %202 = vmatpush.msra.mxu0 0.0
        %203 = vmatpush.msra.mxu0 0.0
        %204 = vmatpush.msra.mxu0 0.0
        %205 = vmatpush.msra.mxu0 0.0
        %206 = vmatpush.msra.mxu0 0.0
        %207 = vmatpush.msra.mxu0 0.0
        %208 = vmatpush.msra.mxu0 0.0
        %209 = vmatpush.msra.mxu0 0.0
        %210 = vmatpush.msra.mxu0 0.0
        %211 = vmatpush.msra.mxu0 0.0
        %212 = vmatpush.msra.mxu0 0.0
        %213 = vmatpush.msra.mxu0 0.0
        %214 = vmatpush.msra.mxu0 0.0
        %215 = vmatpush.msra.mxu0 0.0
        %216 = vmatpush.msra.mxu0 %v194
        %217 = vmatmul.f32.gmra.mxu0 %v199
        %v218 = vpop.f32.mrf.mxu0
        %v219 = vadd.f32 0.0, %v218
        %220 = vdwg.mxu0
        %v221 = vadd.f32 %v188, %v219
        %s222 = scalar_lea.vmem %s1, 16
        %v223 = vld [vmem:[%s222] sm:$0xff]
        %226 = vrot.lane.b32.xlu0 %v194, 127
        %v227 = vpop.permute.xlu0 %226
        %228 = vrot.lane.b32.xlu0 %v195, 127
        %v229 = vpop.permute.xlu0 %228
        %vm230 = vcmask 1039360
        %v231 = vsel %vm230, %v227, %v229
        %v234 = vsel %vm197, %v223, 0
        %236 = vmatpush.msra.mxu0 0.0
        %237 = vmatpush.msra.mxu0 0.0
        %238 = vmatpush.msra.mxu0 0.0
        %239 = vmatpush.msra.mxu0 0.0
        %240 = vmatpush.msra.mxu0 0.0
        %241 = vmatpush.msra.mxu0 0.0
        %242 = vmatpush.msra.mxu0 0.0
        %243 = vmatpush.msra.mxu0 0.0
        %244 = vmatpush.msra.mxu0 0.0
        %245 = vmatpush.msra.mxu0 0.0
        %246 = vmatpush.msra.mxu0 0.0
        %247 = vmatpush.msra.mxu0 0.0
        %248 = vmatpush.msra.mxu0 0.0
        %249 = vmatpush.msra.mxu0 0.0
        %250 = vmatpush.msra.mxu0 0.0
        %251 = vmatpush.msra.mxu0 %v231
        %252 = vmatmul.f32.gmra.mxu0 %v234
        %v253 = vpop.f32.mrf.mxu0
        %v254 = vadd.f32 0.0, %v253
        %255 = vdwg.mxu0
        %v256 = vadd.f32 %v221, %v254
        %s257 = sadd.s32 %s190, 2
        %s258 = smul.addr %s257, 8
        %s259 = scalar_lea.vmem %s182, %s258
        %v260 = vld [vmem:[%s259] sm:$0xff]
        %v261 = vld [vmem:[%s259 + $0x8] sm:$0xff]
        %s262 = scalar_lea.vmem %s1, 8
        %v263 = vld [vmem:[%s262] sm:$0xff]
        %v265 = vsel %vm197, %v263, 0
        %267 = vmatpush.msra.mxu0 0.0
        %268 = vmatpush.msra.mxu0 0.0
        %269 = vmatpush.msra.mxu0 0.0
        %270 = vmatpush.msra.mxu0 0.0
        %271 = vmatpush.msra.mxu0 0.0
        %272 = vmatpush.msra.mxu0 0.0
        %273 = vmatpush.msra.mxu0 0.0
        %274 = vmatpush.msra.mxu0 0.0
        %275 = vmatpush.msra.mxu0 0.0
        %276 = vmatpush.msra.mxu0 0.0
        %277 = vmatpush.msra.mxu0 0.0
        %278 = vmatpush.msra.mxu0 0.0
        %279 = vmatpush.msra.mxu0 0.0
        %280 = vmatpush.msra.mxu0 0.0
        %281 = vmatpush.msra.mxu0 0.0
        %282 = vmatpush.msra.mxu0 %v260
        %283 = vmatmul.f32.gmra.mxu0 %v265
        %v284 = vpop.f32.mrf.mxu0
        %v285 = vadd.f32 0.0, %v284
        %286 = vdwg.mxu0
        %v287 = vadd.f32 %v256, %v285
        %s288 = scalar_lea.vmem %s1, 24
        %v289 = vld [vmem:[%s288] sm:$0xff]
        %292 = vrot.lane.b32.xlu0 %v260, 127
        %v293 = vpop.permute.xlu0 %292
        %294 = vrot.lane.b32.xlu0 %v261, 127
        %v295 = vpop.permute.xlu0 %294
        %v296 = vsel %vm230, %v293, %v295
        %v299 = vsel %vm197, %v289, 0
        %301 = vmatpush.msra.mxu0 0.0
        %302 = vmatpush.msra.mxu0 0.0
        %303 = vmatpush.msra.mxu0 0.0
        %304 = vmatpush.msra.mxu0 0.0
        %305 = vmatpush.msra.mxu0 0.0
        %306 = vmatpush.msra.mxu0 0.0
        %307 = vmatpush.msra.mxu0 0.0
        %308 = vmatpush.msra.mxu0 0.0
        %309 = vmatpush.msra.mxu0 0.0
        %310 = vmatpush.msra.mxu0 0.0
        %311 = vmatpush.msra.mxu0 0.0
        %312 = vmatpush.msra.mxu0 0.0
        %313 = vmatpush.msra.mxu0 0.0
        %314 = vmatpush.msra.mxu0 0.0
        %315 = vmatpush.msra.mxu0 0.0
        %316 = vmatpush.msra.mxu0 %v296
        %317 = vmatmul.f32.gmra.mxu0 %v299
        %v318 = vpop.f32.mrf.mxu0
        %v319 = vadd.f32 0.0, %v318
        %320 = vdwg.mxu0
        %v321 = vadd.f32 %v287, %v319
        %322 = vst [vmem:[%s177] sm:$0xff] %v321
        %s323 = sand.u32 %s107, 1
        %s324 = scalar_lea.sflag [#allocation3], %s323
        %s325 = sand.u32 %s107, 1
        %s326 = smul.addr %s325, 8
        %s327 = scalar_lea.vmem [#allocation2], %s326
        // Predicated region
        $region33: #{conv_downsample.1} parent=31 // pred_check
          %p328 = pneg %p117
        $region34: #{conv_downsample.1} parent=31 // pred_check_branch
          %330 = sbr.rel (%p328) target = $region36
        $region35: #{conv_downsample.1} parent=31 // pred_region
          %332 = vsyncadd %s324, 0
          %s333 = sadd.s32 %s22, %s21
          %s334 = smul.addr %s333, 8
          %s335 = scalar_lea.hbm %s3, %s334
          %s337 = sshll.u32 %s327, 4
          %s338 = int_to_ptr.vmem [resolvable:$true] %s337
          %s339 = sshll.u32 %s335, 4
          %s340 = int_to_ptr.hbm [resolvable:$true] %s339
          %342 = dma.vmem_to_hbm [thread:$0]  %s338, 128, %s340, %s324
        $region36: #{conv_downsample.1} parent=31 // pred_fallthru
          _
      $region32: #{conv_downsample.1} parent=5 // pred_fallthru
        _
      %p343 = scmp.le.s32.totalorder 2, %s12
      // Predicated region
      $region37: #{conv_downsample.1} parent=5 // pred_check
        %p344 = pneg %p343
      $region38: #{conv_downsample.1} parent=5 // pred_check_branch
        %346 = sbr.rel (%p344) target = $region40
      $region39: #{conv_downsample.1} parent=5 // pred_region
        %s347 = ssub.s32 %s12, 2
        // Predicated region
        $region41: #{conv_downsample.1} parent=39 // pred_check
          %p348 = pneg %p123
        $region42: #{conv_downsample.1} parent=39 // pred_check_branch
          %350 = sbr.rel (%p348) target = $region44
        $region43: #{conv_downsample.1} parent=39 // pred_region
          %s351 = sand.u32 %s108, 1
          %s352 = scalar_lea.sflag [#allocation3], %s351
          %s353 = sand.u32 %s108, 1
          %s354 = smul.addr %s353, 8
          %s355 = scalar_lea.vmem [#allocation2], %s354
          %357 = dma.done %s352, 128
        $region44: #{conv_downsample.1} parent=39 // pred_fallthru
          _
      $region40: #{conv_downsample.1} parent=5 // pred_fallthru
        _
    $region6: #{conv_downsample.1} parent=1 // loop_footer
      %s16 = sadd.s32 1, %s12
    $region7: #{conv_downsample.1} parent=1 // loop_footer_branch
      %11 = sbr.rel target = $region3
    $region8: #{conv_downsample.1} parent=1 // loop_exit
      _
    %358 = vsyncpa [#allocation3], 1
    %s359 = scalar_lea.sflag [#allocation3], 1
    %360 = vsyncpa %s359, 1

</llo_original>
